<compile_context>
chip_gen: v7x
topology: tpu7x:2x2x1
jax: 0.10.0
libtpu: 0.0.40
codegen_flags: <defaults>
</compile_context>

<pallas_src>
import jax
import jax.numpy as jnp
from jax.experimental import pallas as pl
from jax.experimental.pallas import tpu as pltpu

FEATURES = 8   # X_train_tensor.shape[1] (synthetic choice for the spec)
H1 = 64
H2 = 32
OUT = 1

TILE_B = 16384   # batch columns per grid step (lane axis)
CHUNK = 256      # lanes per in-kernel chunk (keeps intermediates in vregs)


def mlp_kernel(x_ref, w1_ref, b1_ref, w2_ref, b2_ref, w3_ref, b3_ref, o_ref):
    # Hoist the VMEM-resident parameters once per grid step.
    w1 = w1_ref[...]       # (64, F)  f32
    b1 = b1_ref[...]       # (64, 1)  f32
    w2 = w2_ref[...]       # (32, 64) f32
    b2 = b2_ref[...]       # (32, 1)  f32
    w3 = w3_ref[...]       # (32, 1)  f32  (fc3 weight, stored transposed)
    b3 = b3_ref[...]       # (1, 1)   f32

    tile_b = x_ref.shape[1]
    chunk = min(CHUNK, tile_b)
    n_chunks = tile_b // chunk          # wrapper guarantees divisibility

    def body(c, carry):
        off = pl.multiple_of(c * chunk, chunk)
        x = x_ref[:, pl.ds(off, chunk)]                                  # (F, chunk)
        # fc1 on the MXU (f32 accumulation); ReLU on the VPU.
        h1 = jnp.dot(w1, x, preferred_element_type=jnp.float32) + b1    # (64, chunk)
        h1 = jnp.maximum(h1, 0.0)
        # fc2 on the MXU.
        h2 = jnp.dot(w2, h1, preferred_element_type=jnp.float32) + b2   # (32, chunk)
        h2 = jnp.maximum(h2, 0.0)
        # fc3 (output width 1): VPU multiply + sublane reduce, no MXU pass.
        y = jnp.sum(w3 * h2, axis=0, keepdims=True) + b3                # (1, chunk)
        o_ref[:, pl.ds(off, chunk)] = y.astype(o_ref.dtype)
        return carry

    # Divisor unroll keeps the trip count exact while giving the LLO scheduler
    # visibility across chunk iterations.
    unroll = next(u for u in (8, 4, 2, 1) if n_chunks % u == 0)
    jax.lax.fori_loop(0, n_chunks, body, 0, unroll=unroll)


def water_consumption_nn_tb(x_t, params, tile_b=TILE_B):
    """Production entry: x_t is (F, B) f32 (batch already on the lane axis)."""
    w1, b1, w2, b2, w3t, b3 = params
    F, B = x_t.shape

    # Tile sizing: a multiple of CHUNK, capped at tile_b; for large batches keep
    # an even tile count >= 2 so v7x's two TensorCores both get work.
    tile_b = min(tile_b, pl.cdiv(B, CHUNK) * CHUNK)
    n_tiles = pl.cdiv(B, tile_b)
    if n_tiles == 1 and B > 8 * CHUNK:
        n_tiles = 2
    if n_tiles > 1 and n_tiles % 2 == 1:
        n_tiles += 1
    tile_b = pl.cdiv(pl.cdiv(B, n_tiles), CHUNK) * CHUNK   # rebalance, cut padding
    n_tiles = pl.cdiv(B, tile_b)
    b_pad = n_tiles * tile_b

    if b_pad != B:
        x_t = jnp.pad(x_t, ((0, 0), (0, b_pad - B)))        # bias-only cols, sliced off

    param_bytes = (H1 * F + H1 + H2 * H1 + H2 + H2 * OUT + OUT) * 4
    cost = pl.CostEstimate(
        flops=2 * b_pad * (F * H1 + H1 * H2 + H2 * OUT),
        transcendentals=0,
        bytes_accessed=b_pad * (F + OUT) * 4 + param_bytes,
    )

    grid_spec = pltpu.PrefetchScalarGridSpec(
        num_scalar_prefetch=0,
        grid=(n_tiles,),
        in_specs=[
            pl.BlockSpec((F, tile_b), lambda i: (0, i)),     # x tile (batch on lanes)
            pl.BlockSpec((H1, F), lambda i: (0, 0)),         # w1 VMEM-resident
            pl.BlockSpec((H1, 1), lambda i: (0, 0)),         # b1
            pl.BlockSpec((H2, H1), lambda i: (0, 0)),        # w2
            pl.BlockSpec((H2, 1), lambda i: (0, 0)),         # b2
            pl.BlockSpec((H2, OUT), lambda i: (0, 0)),       # w3 (stored (32, 1))
            pl.BlockSpec((OUT, 1), lambda i: (0, 0)),        # b3
        ],
        out_specs=pl.BlockSpec((OUT, tile_b), lambda i: (0, i)),
    )

    y_t = pl.pallas_call(
        mlp_kernel,
        out_shape=jax.ShapeDtypeStruct((OUT, b_pad), jnp.float32),
        grid_spec=grid_spec,
        compiler_params=pltpu.CompilerParams(
            dimension_semantics=("parallel",),               # megacore on v7x
            vmem_limit_bytes=32 * 1024 * 1024,               # footprint is only ~3 MiB
        ),
        cost_estimate=cost,
    )(x_t, w1, b1, w2, b2, w3t, b3)

    return y_t[:, :B]                                        # (1, B)


def water_consumption_nn(x, params, tile_b=TILE_B):
    """Convenience wrapper matching the PyTorch contract: x is (B, F) f32."""
    # TODO(synk): produce x in (F, B) layout upstream so this extra transpose
    # pass (a separate XLA HBM read/write) is amortized away for large batches.
    y_t = water_consumption_nn_tb(jnp.transpose(x), params, tile_b)
    return jnp.transpose(y_t)                                # (B, 1)


def init_params(key):
    """PyTorch-style uniform(-1/sqrt(fan_in), +1/sqrt(fan_in)) init, all f32.

    Weights kept in PyTorch's (out, in) layout; fc3's weight is stored
    transposed as (32, 1) for the in-kernel VPU multiply+reduce. Biases are
    (out, 1) so they broadcast over the lane (batch) axis.
    """
    ks = jax.random.split(key, 6)

    def lin(kw, kb, fan_in, fan_out):
        bound = 1.0 / jnp.sqrt(jnp.float32(fan_in))
        w = jax.random.uniform(kw, (fan_out, fan_in), jnp.float32, -bound, bound)
        b = jax.random.uniform(kb, (fan_out, 1), jnp.float32, -bound, bound)
        return w, b

    w1, b1 = lin(ks[0], ks[1], FEATURES, H1)
    w2, b2 = lin(ks[2], ks[3], H1, H2)
    w3, b3 = lin(ks[4], ks[5], H2, OUT)
    return (w1, b1, w2, b2, jnp.transpose(w3), b3)


def reference(x, params):
    """Plain-JAX f32 forward identical to the PyTorch module."""
    w1, b1, w2, b2, w3t, b3 = params
    h1 = jnp.maximum(x @ w1.T + b1[:, 0], 0.0)
    h2 = jnp.maximum(h1 @ w2.T + b2[:, 0], 0.0)
    return h2 @ w3t + b3


if __name__ == "__main__":
    key = jax.random.PRNGKey(0)
    k_x, k_p = jax.random.split(key)

    B = 16
    x = jax.random.normal(k_x, (B, FEATURES), dtype=jnp.float32)  # "standardized" inputs
    params = init_params(k_p)

    y = water_consumption_nn(x, params)
    jax.block_until_ready(y)

    y_ref = reference(x, params)
    assert y.shape == (B, OUT)
    assert jnp.allclose(y, y_ref, atol=1e-3, rtol=1e-3), "mismatch vs reference"

    print("KERNEL_OK")
</pallas_src>

<mosaic_0001>
module attributes {stable_mosaic.version = 11 : i64} {
  func.func @mlp_kernel(%arg0: i32, %arg1: memref<8x256xf32, #tpu.memory_space<vmem>>, %arg2: memref<64x8xf32, #tpu.memory_space<vmem>>, %arg3: memref<64x1xf32, #tpu.memory_space<vmem>>, %arg4: memref<32x64xf32, #tpu.memory_space<vmem>>, %arg5: memref<32x1xf32, #tpu.memory_space<vmem>>, %arg6: memref<32x1xf32, #tpu.memory_space<vmem>>, %arg7: memref<1x1xf32, #tpu.memory_space<vmem>>, %arg8: memref<1x256xf32, #tpu.memory_space<vmem>>) attributes {dimension_semantics = [#tpu.dimension_semantics<parallel>], iteration_bounds = array<i64: 1>, scalar_prefetch = 0 : i64, scratch_operands = 0 : i64, tpu.core_type = #tpu.core_type<tc>, window_params = [{transform_indices = @transform_0, window_bounds = array<i64: 8, 256>}, {pipeline_mode = #tpu.pipeline_mode<synchronous>, transform_indices = @transform_1, window_bounds = array<i64: 64, 8>}, {pipeline_mode = #tpu.pipeline_mode<synchronous>, transform_indices = @transform_2, window_bounds = array<i64: 64, 1>}, {pipeline_mode = #tpu.pipeline_mode<synchronous>, transform_indices = @transform_3, window_bounds = array<i64: 32, 64>}, {pipeline_mode = #tpu.pipeline_mode<synchronous>, transform_indices = @transform_4, window_bounds = array<i64: 32, 1>}, {pipeline_mode = #tpu.pipeline_mode<synchronous>, transform_indices = @transform_5, window_bounds = array<i64: 32, 1>}, {pipeline_mode = #tpu.pipeline_mode<synchronous>, transform_indices = @transform_6, window_bounds = array<i64: 1, 1>}, {transform_indices = @transform_7, window_bounds = array<i64: 1, 256>}]} {
    %c0 = arith.constant 0 : index
    %c0_0 = arith.constant 0 : index
    %0 = vector.load %arg2[%c0, %c0_0] : memref<64x8xf32, #tpu.memory_space<vmem>>, vector<64x8xf32>
    %c0_1 = arith.constant 0 : index
    %c0_2 = arith.constant 0 : index
    %1 = vector.load %arg3[%c0_1, %c0_2] : memref<64x1xf32, #tpu.memory_space<vmem>>, vector<64x1xf32>
    %c0_3 = arith.constant 0 : index
    %c0_4 = arith.constant 0 : index
    %2 = vector.load %arg4[%c0_3, %c0_4] : memref<32x64xf32, #tpu.memory_space<vmem>>, vector<32x64xf32>
    %c0_5 = arith.constant 0 : index
    %c0_6 = arith.constant 0 : index
    %3 = vector.load %arg5[%c0_5, %c0_6] : memref<32x1xf32, #tpu.memory_space<vmem>>, vector<32x1xf32>
    %c0_7 = arith.constant 0 : index
    %c0_8 = arith.constant 0 : index
    %4 = vector.load %arg6[%c0_7, %c0_8] : memref<32x1xf32, #tpu.memory_space<vmem>>, vector<32x1xf32>
    %c0_9 = arith.constant 0 : index
    %c0_10 = arith.constant 0 : index
    %5 = vector.load %arg7[%c0_9, %c0_10] : memref<1x1xf32, #tpu.memory_space<vmem>>, vector<1x1xf32>
    %c0_i32 = arith.constant 0 : i32
    %c256_i32 = arith.constant 256 : i32
    %6 = arith.muli %c0_i32, %c256_i32 : i32
    %7 = tpu.assume_multiple %6, 256 : i32
    %c0_11 = arith.constant 0 : index
    %8 = arith.index_cast %7 : i32 to index
    %9 = vector.load %arg1[%c0_11, %8] : memref<8x256xf32, #tpu.memory_space<vmem>>, vector<8x256xf32>
    %cst = arith.constant dense<0.000000e+00> : vector<64x256xf32>
    %10 = tpu.matmul %0, %9, %cst {dimension_numbers = #tpu.dot_dimension_numbers<[1], [0], [0], [1], [0, 0, 1, 1], [], []>} : vector<64x8xf32>, vector<8x256xf32>, vector<64x256xf32> -> vector<64x256xf32>
    %11 = vector.broadcast %1 : vector<64x1xf32> to vector<64x256xf32>
    %12 = arith.addf %10, %11 : vector<64x256xf32>
    %cst_12 = arith.constant 0.000000e+00 : f32
    %13 = vector.broadcast %cst_12 : f32 to vector<64x256xf32>
    %14 = arith.maximumf %12, %13 : vector<64x256xf32>
    %cst_13 = arith.constant dense<0.000000e+00> : vector<32x256xf32>
    %15 = tpu.matmul %2, %14, %cst_13 {dimension_numbers = #tpu.dot_dimension_numbers<[1], [0], [0], [1], [0, 0, 1, 1], [], []>} : vector<32x64xf32>, vector<64x256xf32>, vector<32x256xf32> -> vector<32x256xf32>
    %16 = vector.broadcast %3 : vector<32x1xf32> to vector<32x256xf32>
    %17 = arith.addf %15, %16 : vector<32x256xf32>
    %cst_14 = arith.constant 0.000000e+00 : f32
    %18 = vector.broadcast %cst_14 : f32 to vector<32x256xf32>
    %19 = arith.maximumf %17, %18 : vector<32x256xf32>
    %20 = vector.broadcast %4 : vector<32x1xf32> to vector<32x256xf32>
    %21 = arith.mulf %20, %19 : vector<32x256xf32>
    %cst_15 = arith.constant dense<0.000000e+00> : vector<256xf32>
    %22 = vector.multi_reduction <add>, %21, %cst_15 [0] : vector<32x256xf32> to vector<256xf32>
    %23 = vector.shape_cast %22 : vector<256xf32> to vector<1x256xf32>
    %24 = vector.broadcast %5 : vector<1x1xf32> to vector<1x256xf32>
    %25 = arith.addf %23, %24 : vector<1x256xf32>
    %c0_16 = arith.constant 0 : index
    %26 = arith.index_cast %7 : i32 to index
    %27 = vector.load %arg8[%c0_16, %26] : memref<1x256xf32, #tpu.memory_space<vmem>>, vector<1x256xf32>
    tpu.vector_store %arg8[%c0_16, %26], %25 {strides = array<i32>} : memref<1x256xf32, #tpu.memory_space<vmem>>, vector<1x256xf32>,
    %c1_i32 = arith.constant 1 : i32
    return
  }
  func.func @transform_0(%arg0: i32) -> (i32, i32) {
    %c0_i32 = arith.constant 0 : i32
    %c0_i32_0 = arith.constant 0 : i32
    return %c0_i32, %arg0 : i32, i32
  }
  func.func @transform_1(%arg0: i32) -> (i32, i32) {
    %c0_i32 = arith.constant 0 : i32
    %c0_i32_0 = arith.constant 0 : i32
    %c0_i32_1 = arith.constant 0 : i32
    return %c0_i32, %c0_i32_0 : i32, i32
  }
  func.func @transform_2(%arg0: i32) -> (i32, i32) {
    %c0_i32 = arith.constant 0 : i32
    %c0_i32_0 = arith.constant 0 : i32
    %c0_i32_1 = arith.constant 0 : i32
    return %c0_i32, %c0_i32_0 : i32, i32
  }
  func.func @transform_3(%arg0: i32) -> (i32, i32) {
    %c0_i32 = arith.constant 0 : i32
    %c0_i32_0 = arith.constant 0 : i32
    %c0_i32_1 = arith.constant 0 : i32
    return %c0_i32, %c0_i32_0 : i32, i32
  }
  func.func @transform_4(%arg0: i32) -> (i32, i32) {
    %c0_i32 = arith.constant 0 : i32
    %c0_i32_0 = arith.constant 0 : i32
    %c0_i32_1 = arith.constant 0 : i32
    return %c0_i32, %c0_i32_0 : i32, i32
  }
  func.func @transform_5(%arg0: i32) -> (i32, i32) {
    %c0_i32 = arith.constant 0 : i32
    %c0_i32_0 = arith.constant 0 : i32
    %c0_i32_1 = arith.constant 0 : i32
    return %c0_i32, %c0_i32_0 : i32, i32
  }
  func.func @transform_6(%arg0: i32) -> (i32, i32) {
    %c0_i32 = arith.constant 0 : i32
    %c0_i32_0 = arith.constant 0 : i32
    %c0_i32_1 = arith.constant 0 : i32
    return %c0_i32, %c0_i32_0 : i32, i32
  }
  func.func @transform_7(%arg0: i32) -> (i32, i32) {
    %c0_i32 = arith.constant 0 : i32
    %c0_i32_0 = arith.constant 0 : i32
    return %c0_i32, %arg0 : i32, i32
  }
}

</mosaic_0001>

<llo_original>
// kernel: tpu_custom_call.1
$region0: #{tpu_custom_call.1}
  #allocation0 [shape = 'u32[]', space=smem, size = 0x4, offset = 0x4, fixed_abs, tag = 'smem constant byte address 0x4 - core index']
  #allocation1 [shape = 'u32[144,128]{1,0:T(1,128)}', space=vmem, size = 0x12000, scoped, tag = 'internal scratch']
  #allocation2 [shape = 'f32[1,1]{1,0:T(1,128)S(1)}', space=vmem, size = 0x200, scoped, tag = 'scoped memory for tpu_custom_call.1']
  %s0 = inlined_call_operand.vmem [shape: f32[8,256], index: 0, kind: input, shape index: {}]
  %s1 = inlined_call_operand.vmem [shape: f32[64,8], index: 1, kind: input, shape index: {}]
  %s2 = inlined_call_operand.vmem [shape: f32[64,1], index: 2, kind: input, shape index: {}]
  %s3 = inlined_call_operand.vmem [shape: f32[32,64], index: 3, kind: input, shape index: {}]
  %s4 = inlined_call_operand.vmem [shape: f32[32,1], index: 4, kind: input, shape index: {}]
  %s5 = inlined_call_operand.vmem [shape: f32[32,1], index: 5, kind: input, shape index: {}]
  %s6 = inlined_call_operand.<no memory space> [shape: f32[1,1], index: 6, kind: input, shape index: {}]
  %s7 = inlined_call_operand.hbm [shape: f32[1,256], index: 7, kind: output, shape index: {}]
  %s8 = sld [smem:[#allocation0]]
  $region38: #{tpu_custom_call.1} parent=0
    _
  %s10 = ssub.s32 1, %s8
  %s11 = scalar_select 0, %s10, %s8
  %v12 = vstv %s6
  %13 = vst [vmem:[#allocation2] sm:$0x1] %v12
  $region1: #{tpu_custom_call.1} parent=0
    #allocation3 [shape = 'u8[1024]{0}', space=vmem, size = 0x400, scoped, tag = 'output window, operand 0, single buffered']
    #allocation4 [shape = 's32[1]{0}', space=sflag, size = 0x4, scoped, tag = 'scoped memory for tpu_custom_call.1']
    %14 = vsyncpa [#allocation4], 0
    // Predicated region
    $region2: #{tpu_custom_call.1} parent=1 // pred_check
      _
    $region3: #{tpu_custom_call.1} parent=1 // pred_check_branch
      %16 = sbr.rel (0) target = $region5
    $region4: #{tpu_custom_call.1} parent=1 // pred_region
      _
    $region5: #{tpu_custom_call.1} parent=1 // pred_fallthru
      _
    // Predicated region
    $region6: #{tpu_custom_call.1} parent=1 // pred_check
      _
    $region7: #{tpu_custom_call.1} parent=1 // pred_check_branch
      %18 = sbr.rel (0) target = $region9
    $region8: #{tpu_custom_call.1} parent=1 // pred_region
      _
    $region9: #{tpu_custom_call.1} parent=1 // pred_fallthru
      _
    // Predicated region
    $region10: #{tpu_custom_call.1} parent=1 // pred_check
      _
    $region11: #{tpu_custom_call.1} parent=1 // pred_check_branch
      %20 = sbr.rel (0) target = $region13
    $region12: #{tpu_custom_call.1} parent=1 // pred_region
      _
    $region13: #{tpu_custom_call.1} parent=1 // pred_fallthru
      _
    // Predicated region
    $region14: #{tpu_custom_call.1} parent=1 // pred_check
      _
    $region15: #{tpu_custom_call.1} parent=1 // pred_check_branch
      %22 = sbr.rel (0) target = $region17
    $region16: #{tpu_custom_call.1} parent=1 // pred_region
      _
    $region17: #{tpu_custom_call.1} parent=1 // pred_fallthru
      _
    // Predicated region
    $region18: #{tpu_custom_call.1} parent=1 // pred_check
      _
    $region19: #{tpu_custom_call.1} parent=1 // pred_check_branch
      %24 = sbr.rel (0) target = $region21
    $region20: #{tpu_custom_call.1} parent=1 // pred_region
      _
    $region21: #{tpu_custom_call.1} parent=1 // pred_fallthru
      _
    // Predicated region
    $region22: #{tpu_custom_call.1} parent=1 // pred_check
      _
    $region23: #{tpu_custom_call.1} parent=1 // pred_check_branch
      %26 = sbr.rel (0) target = $region25
    $region24: #{tpu_custom_call.1} parent=1 // pred_region
      _
    $region25: #{tpu_custom_call.1} parent=1 // pred_fallthru
      _
    // Predicated region
    $region26: #{tpu_custom_call.1} parent=1 // pred_check
      _
    $region27: #{tpu_custom_call.1} parent=1 // pred_check_branch
      %28 = sbr.rel (0) target = $region29
    $region28: #{tpu_custom_call.1} parent=1 // pred_region
      _
    $region29: #{tpu_custom_call.1} parent=1 // pred_fallthru
      _
    %v29 = vld [vmem:[%s1] sm:$0xff]
    %v30 = vld [vmem:[%s1 + $0x8] sm:$0xff]
    %v31 = vld [vmem:[%s1 + $0x10] sm:$0xff]
    %v32 = vld [vmem:[%s1 + $0x18] sm:$0xff]
    %v33 = vld [vmem:[%s1 + $0x20] sm:$0xff]
    %v34 = vld [vmem:[%s1 + $0x28] sm:$0xff]
    %v35 = vld [vmem:[%s1 + $0x30] sm:$0xff]
    %v36 = vld [vmem:[%s1 + $0x38] sm:$0xff]
    %v37 = vld [vmem:[%s2] sm:$0xff]
    %v38 = vld [vmem:[%s2 + $0x8] sm:$0xff]
    %v39 = vld [vmem:[%s2 + $0x10] sm:$0xff]
    %v40 = vld [vmem:[%s2 + $0x18] sm:$0xff]
    %v41 = vld [vmem:[%s2 + $0x20] sm:$0xff]
    %v42 = vld [vmem:[%s2 + $0x28] sm:$0xff]
    %v43 = vld [vmem:[%s2 + $0x30] sm:$0xff]
    %v44 = vld [vmem:[%s2 + $0x38] sm:$0xff]
    %v45 = vld [vmem:[%s3] sm:$0xff]
    %v46 = vld [vmem:[%s3 + $0x8] sm:$0xff]
    %v47 = vld [vmem:[%s3 + $0x10] sm:$0xff]
    %v48 = vld [vmem:[%s3 + $0x18] sm:$0xff]
    %v49 = vld [vmem:[%s4] sm:$0xff]
    %v50 = vld [vmem:[%s4 + $0x8] sm:$0xff]
    %v51 = vld [vmem:[%s4 + $0x10] sm:$0xff]
    %v52 = vld [vmem:[%s4 + $0x18] sm:$0xff]
    %v53 = vld [vmem:[%s5] sm:$0xff]
    %v54 = vld [vmem:[%s5 + $0x8] sm:$0xff]
    %v55 = vld [vmem:[%s5 + $0x10] sm:$0xff]
    %v56 = vld [vmem:[%s5 + $0x18] sm:$0xff]
    %v57 = vld [vmem:[#allocation2] sm:$0x1]
    %v58 = vld [vmem:[%s0] sm:$0xff]
    %v59 = vld [vmem:[%s0 + $0x8] sm:$0xff]
    %61 = vset.pattern.permute.xlu0 0
    %62 = vperm.xlu0 %61, %v37
    %v63 = vpop.permute.xlu0 %62
    %66 = vset.pattern.permute.xlu0 0
    %67 = vperm.xlu0 %66, %v38
    %v68 = vpop.permute.xlu0 %67
    %71 = vset.pattern.permute.xlu0 0
    %72 = vperm.xlu0 %71, %v39
    %v73 = vpop.permute.xlu0 %72
    %76 = vset.pattern.permute.xlu0 0
    %77 = vperm.xlu0 %76, %v40
    %v78 = vpop.permute.xlu0 %77
    %81 = vset.pattern.permute.xlu0 0
    %82 = vperm.xlu0 %81, %v41
    %v83 = vpop.permute.xlu0 %82
    %86 = vset.pattern.permute.xlu0 0
    %87 = vperm.xlu0 %86, %v42
    %v88 = vpop.permute.xlu0 %87
    %91 = vset.pattern.permute.xlu0 0
    %92 = vperm.xlu0 %91, %v43
    %v93 = vpop.permute.xlu0 %92
    %96 = vset.pattern.permute.xlu0 0
    %97 = vperm.xlu0 %96, %v44
    %v98 = vpop.permute.xlu0 %97
    %vm100 = vcmask 64512
    %v102 = vsel %vm100, %v29, 0
    %v105 = vsel %vm100, %v30, 0
    %v108 = vsel %vm100, %v31, 0
    %v111 = vsel %vm100, %v32, 0
    %v114 = vsel %vm100, %v33, 0
    %v117 = vsel %vm100, %v34, 0
    %v120 = vsel %vm100, %v35, 0
    %v123 = vsel %vm100, %v36, 0
    %125 = vmatprep.subr.mxu0 %v59
    %126 = vmatpush1.msra.mxu0 %v58
    %127 = vmatprep.subr.mxu0 0.0
    %128 = vmatpush1.msra.mxu0 0.0
    %129 = vmatprep.subr.mxu0 0.0
    %130 = vmatpush1.msra.mxu0 0.0
    %131 = vmatprep.subr.mxu0 0.0
    %132 = vmatpush1.msra.mxu0 0.0
    %133 = vmatprep.subr.mxu0 0.0
    %134 = vmatpush1.msra.mxu0 0.0
    %135 = vmatprep.subr.mxu0 0.0
    %136 = vmatpush1.msra.mxu0 0.0
    %137 = vmatprep.subr.mxu0 0.0
    %138 = vmatpush1.msra.mxu0 0.0
    %139 = vmatprep.subr.mxu0 0.0
    %140 = vmatpush1.msra.mxu0 0.0
    %141 = vmatprep.subr.mxu0 0.0
    %142 = vmatpush1.msra.mxu0 0.0
    %143 = vmatprep.subr.mxu0 0.0
    %144 = vmatpush1.msra.mxu0 0.0
    %145 = vmatprep.subr.mxu0 0.0
    %146 = vmatpush1.msra.mxu0 0.0
    %147 = vmatprep.subr.mxu0 0.0
    %148 = vmatpush1.msra.mxu0 0.0
    %149 = vmatprep.subr.mxu0 0.0
    %150 = vmatpush1.msra.mxu0 0.0
    %151 = vmatprep.subr.mxu0 0.0
    %152 = vmatpush1.msra.mxu0 0.0
    %153 = vmatprep.subr.mxu0 0.0
    %154 = vmatpush1.msra.mxu0 0.0
    %155 = vmatprep.subr.mxu0 0.0
    %156 = vmatpush1.msra.mxu0 0.0
    %157 = vmatprep.subr.mxu0 0.0
    %158 = vmatpush1.msra.mxu0 0.0
    %159 = vmatprep.subr.mxu0 0.0
    %160 = vmatpush1.msra.mxu0 0.0
    %161 = vmatprep.subr.mxu0 0.0
    %162 = vmatpush1.msra.mxu0 0.0
    %163 = vmatprep.subr.mxu0 0.0
    %164 = vmatpush1.msra.mxu0 0.0
    %165 = vmatprep.subr.mxu0 0.0
    %166 = vmatpush1.msra.mxu0 0.0
    %167 = vmatprep.subr.mxu0 0.0
    %168 = vmatpush1.msra.mxu0 0.0
    %169 = vmatprep.subr.mxu0 0.0
    %170 = vmatpush1.msra.mxu0 0.0
    %171 = vmatprep.subr.mxu0 0.0
    %172 = vmatpush1.msra.mxu0 0.0
    %173 = vmatprep.subr.mxu0 0.0
    %174 = vmatpush1.msra.mxu0 0.0
    %175 = vmatprep.subr.mxu0 0.0
    %176 = vmatpush1.msra.mxu0 0.0
    %177 = vmatprep.subr.mxu0 0.0
    %178 = vmatpush1.msra.mxu0 0.0
    %179 = vmatprep.subr.mxu0 0.0
    %180 = vmatpush1.msra.mxu0 0.0
    %181 = vmatprep.subr.mxu0 0.0
    %182 = vmatpush1.msra.mxu0 0.0
    %183 = vmatprep.subr.mxu0 0.0
    %184 = vmatpush1.msra.mxu0 0.0
    %185 = vmatprep.subr.mxu0 0.0
    %186 = vmatpush1.msra.mxu0 0.0
    %187 = vmatprep.subr.mxu0 0.0
    %188 = vmatpush1.msra.mxu0 0.0
    %189 = vmatprep.mubr.f32.mxu0 0.0
    %190 = vmatmul.mubr.f32.gmra.mrb[0].mxu0 %v102
    %v191 = vpop.f32.mrb[0].mxu0
    %v192 = vadd.f32 %v63, %v191
    %v193 = vpop.f32.mrb[0].mxu0
    %v194 = vadd.f32 %v63, %v193
    %195 = vmatprep.mubr.f32.mxu0 0.0
    %196 = vmatmul.mubr.f32.gmra.mrb[0].mxu0 %v105
    %v197 = vpop.f32.mrb[0].mxu0
    %v198 = vadd.f32 %v68, %v197
    %v199 = vpop.f32.mrb[0].mxu0
    %v200 = vadd.f32 %v68, %v199
    %201 = vmatprep.mubr.f32.mxu0 0.0
    %202 = vmatmul.mubr.f32.gmra.mrb[0].mxu0 %v108
    %v203 = vpop.f32.mrb[0].mxu0
    %v204 = vadd.f32 %v73, %v203
    %v205 = vpop.f32.mrb[0].mxu0
    %v206 = vadd.f32 %v73, %v205
    %207 = vmatprep.mubr.f32.mxu0 0.0
    %208 = vmatmul.mubr.f32.gmra.mrb[0].mxu0 %v111
    %v209 = vpop.f32.mrb[0].mxu0
    %v210 = vadd.f32 %v78, %v209
    %v211 = vpop.f32.mrb[0].mxu0
    %v212 = vadd.f32 %v78, %v211
    %213 = vmatprep.mubr.f32.mxu0 0.0
    %214 = vmatmul.mubr.f32.gmra.mrb[0].mxu0 %v114
    %v215 = vpop.f32.mrb[0].mxu0
    %v216 = vadd.f32 %v83, %v215
    %v217 = vpop.f32.mrb[0].mxu0
    %v218 = vadd.f32 %v83, %v217
    %219 = vmatprep.mubr.f32.mxu0 0.0
    %220 = vmatmul.mubr.f32.gmra.mrb[0].mxu0 %v117
    %v221 = vpop.f32.mrb[0].mxu0
    %v222 = vadd.f32 %v88, %v221
    %v223 = vpop.f32.mrb[0].mxu0
    %v224 = vadd.f32 %v88, %v223
    %225 = vmatprep.mubr.f32.mxu0 0.0
    %226 = vmatmul.mubr.f32.gmra.mrb[0].mxu0 %v120
    %v227 = vpop.f32.mrb[0].mxu0
    %v228 = vadd.f32 %v93, %v227
    %v229 = vpop.f32.mrb[0].mxu0
    %v230 = vadd.f32 %v93, %v229
    %231 = vmatprep.mubr.f32.mxu0 0.0
    %232 = vmatmul.mubr.f32.gmra.mrb[0].mxu0 %v123
    %v233 = vpop.f32.mrb[0].mxu0
    %v234 = vadd.f32 %v98, %v233
    %v235 = vpop.f32.mrb[0].mxu0
    %v236 = vadd.f32 %v98, %v235
    %237 = vdwg.mxu0
    %v238 = vmax.f32 %v192, 0.0
    %v239 = vmax.f32 %v194, 0.0
    %v240 = vmax.f32 %v198, 0.0
    %v241 = vmax.f32 %v200, 0.0
    %v242 = vmax.f32 %v204, 0.0
    %v243 = vmax.f32 %v206, 0.0
    %v244 = vmax.f32 %v210, 0.0
    %v245 = vmax.f32 %v212, 0.0
    %v246 = vmax.f32 %v216, 0.0
    %v247 = vmax.f32 %v218, 0.0
    %v248 = vmax.f32 %v222, 0.0
    %v249 = vmax.f32 %v224, 0.0
    %v250 = vmax.f32 %v228, 0.0
    %v251 = vmax.f32 %v230, 0.0
    %v252 = vmax.f32 %v234, 0.0
    %v253 = vmax.f32 %v236, 0.0
    %255 = vset.pattern.permute.xlu0 0
    %256 = vperm.xlu0 %255, %v49
    %v257 = vpop.permute.xlu0 %256
    %260 = vset.pattern.permute.xlu0 0
    %261 = vperm.xlu0 %260, %v50
    %v262 = vpop.permute.xlu0 %261
    %265 = vset.pattern.permute.xlu0 0
    %266 = vperm.xlu0 %265, %v51
    %v267 = vpop.permute.xlu0 %266
    %270 = vset.pattern.permute.xlu0 0
    %271 = vperm.xlu0 %270, %v52
    %v272 = vpop.permute.xlu0 %271
    %vm274 = vcmask 523264
    %v276 = vsel %vm274, %v45, 0
    %v279 = vsel %vm274, %v46, 0
    %v282 = vsel %vm274, %v47, 0
    %v285 = vsel %vm274, %v48, 0
    %287 = vmatprep.subr.mxu0 %v239
    %288 = vmatpush1.msra.mxu0 %v238
    %289 = vmatprep.subr.mxu0 %v241
    %290 = vmatpush1.msra.mxu0 %v240
    %291 = vmatprep.subr.mxu0 %v243
    %292 = vmatpush1.msra.mxu0 %v242
    %293 = vmatprep.subr.mxu0 %v245
    %294 = vmatpush1.msra.mxu0 %v244
    %295 = vmatprep.subr.mxu0 %v247
    %296 = vmatpush1.msra.mxu0 %v246
    %297 = vmatprep.subr.mxu0 %v249
    %298 = vmatpush1.msra.mxu0 %v248
    %299 = vmatprep.subr.mxu0 %v251
    %300 = vmatpush1.msra.mxu0 %v250
    %301 = vmatprep.subr.mxu0 %v253
    %302 = vmatpush1.msra.mxu0 %v252
    %303 = vmatprep.subr.mxu0 0.0
    %304 = vmatpush1.msra.mxu0 0.0
    %305 = vmatprep.subr.mxu0 0.0
    %306 = vmatpush1.msra.mxu0 0.0
    %307 = vmatprep.subr.mxu0 0.0
    %308 = vmatpush1.msra.mxu0 0.0
    %309 = vmatprep.subr.mxu0 0.0
    %310 = vmatpush1.msra.mxu0 0.0
    %311 = vmatprep.subr.mxu0 0.0
    %312 = vmatpush1.msra.mxu0 0.0
    %313 = vmatprep.subr.mxu0 0.0
    %314 = vmatpush1.msra.mxu0 0.0
    %315 = vmatprep.subr.mxu0 0.0
    %316 = vmatpush1.msra.mxu0 0.0
    %317 = vmatprep.subr.mxu0 0.0
    %318 = vmatpush1.msra.mxu0 0.0
    %319 = vmatprep.subr.mxu0 0.0
    %320 = vmatpush1.msra.mxu0 0.0
    %321 = vmatprep.subr.mxu0 0.0
    %322 = vmatpush1.msra.mxu0 0.0
    %323 = vmatprep.subr.mxu0 0.0
    %324 = vmatpush1.msra.mxu0 0.0
    %325 = vmatprep.subr.mxu0 0.0
    %326 = vmatpush1.msra.mxu0 0.0
    %327 = vmatprep.subr.mxu0 0.0
    %328 = vmatpush1.msra.mxu0 0.0
    %329 = vmatprep.subr.mxu0 0.0
    %330 = vmatpush1.msra.mxu0 0.0
    %331 = vmatprep.subr.mxu0 0.0
    %332 = vmatpush1.msra.mxu0 0.0
    %333 = vmatprep.subr.mxu0 0.0
    %334 = vmatpush1.msra.mxu0 0.0
    %335 = vmatprep.subr.mxu0 0.0
    %336 = vmatpush1.msra.mxu0 0.0
    %337 = vmatprep.subr.mxu0 0.0
    %338 = vmatpush1.msra.mxu0 0.0
    %339 = vmatprep.subr.mxu0 0.0
    %340 = vmatpush1.msra.mxu0 0.0
    %341 = vmatprep.subr.mxu0 0.0
    %342 = vmatpush1.msra.mxu0 0.0
    %343 = vmatprep.subr.mxu0 0.0
    %344 = vmatpush1.msra.mxu0 0.0
    %345 = vmatprep.subr.mxu0 0.0
    %346 = vmatpush1.msra.mxu0 0.0
    %347 = vmatprep.subr.mxu0 0.0
    %348 = vmatpush1.msra.mxu0 0.0
    %349 = vmatprep.subr.mxu0 0.0
    %350 = vmatpush1.msra.mxu0 0.0
    %351 = vmatprep.mubr.f32.mxu0 0.0
    %352 = vmatmul.mubr.f32.gmra.mrb[0].mxu0 %v276
    %v353 = vpop.f32.mrb[0].mxu0
    %v354 = vadd.f32 %v257, %v353
    %v355 = vpop.f32.mrb[0].mxu0
    %v356 = vadd.f32 %v257, %v355
    %357 = vmatprep.mubr.f32.mxu0 0.0
    %358 = vmatmul.mubr.f32.gmra.mrb[0].mxu0 %v279
    %v359 = vpop.f32.mrb[0].mxu0
    %v360 = vadd.f32 %v262, %v359
    %v361 = vpop.f32.mrb[0].mxu0
    %v362 = vadd.f32 %v262, %v361
    %363 = vmatprep.mubr.f32.mxu0 0.0
    %364 = vmatmul.mubr.f32.gmra.mrb[0].mxu0 %v282
    %v365 = vpop.f32.mrb[0].mxu0
    %v366 = vadd.f32 %v267, %v365
    %v367 = vpop.f32.mrb[0].mxu0
    %v368 = vadd.f32 %v267, %v367
    %369 = vmatprep.mubr.f32.mxu0 0.0
    %370 = vmatmul.mubr.f32.gmra.mrb[0].mxu0 %v285
    %v371 = vpop.f32.mrb[0].mxu0
    %v372 = vadd.f32 %v272, %v371
    %v373 = vpop.f32.mrb[0].mxu0
    %v374 = vadd.f32 %v272, %v373
    %375 = vdwg.mxu0
    %v376 = vmax.f32 %v354, 0.0
    %v377 = vmax.f32 %v356, 0.0
    %v378 = vmax.f32 %v360, 0.0
    %v379 = vmax.f32 %v362, 0.0
    %v380 = vmax.f32 %v366, 0.0
    %v381 = vmax.f32 %v368, 0.0
    %v382 = vmax.f32 %v372, 0.0
    %v383 = vmax.f32 %v374, 0.0
    %385 = vset.pattern.permute.xlu0 0
    %386 = vperm.xlu0 %385, %v53
    %v387 = vpop.permute.xlu0 %386
    %390 = vset.pattern.permute.xlu0 0
    %391 = vperm.xlu0 %390, %v54
    %v392 = vpop.permute.xlu0 %391
    %395 = vset.pattern.permute.xlu0 0
    %396 = vperm.xlu0 %395, %v55
    %v397 = vpop.permute.xlu0 %396
    %400 = vset.pattern.permute.xlu0 0
    %401 = vperm.xlu0 %400, %v56
    %v402 = vpop.permute.xlu0 %401
    %v404 = vmul.f32 %v387, %v376
    %v405 = vmul.f32 %v387, %v377
    %v406 = vmul.f32 %v392, %v378
    %v407 = vmul.f32 %v392, %v379
    %v408 = vmul.f32 %v397, %v380
    %v409 = vmul.f32 %v397, %v381
    %v410 = vmul.f32 %v402, %v382
    %v411 = vmul.f32 %v402, %v383
    %v412 = vadd.f32 %v404, %v406
    %v413 = vadd.f32 %v412, %v408
    %v414 = vadd.f32 %v413, %v410
    %v415 = vrot.slane %v414, 4
    %v416 = vadd.f32 %v414, %v415
    %v417 = vrot.slane %v416, 2
    %v418 = vadd.f32 %v416, %v417
    %v419 = vrot.slane %v418, 1
    %v420 = vadd.f32 %v418, %v419
    %v421 = vadd.f32 %v405, %v407
    %v422 = vadd.f32 %v421, %v409
    %v423 = vadd.f32 %v422, %v411
    %v424 = vrot.slane %v423, 4
    %v425 = vadd.f32 %v423, %v424
    %v426 = vrot.slane %v425, 2
    %v427 = vadd.f32 %v425, %v426
    %v428 = vrot.slane %v427, 1
    %v429 = vadd.f32 %v427, %v428
    %431 = vset.pattern.permute.xlu0 0
    %432 = vperm.xlu0 %431, %v57
    %v433 = vpop.permute.xlu0 %432
    %v435 = vlaneseq
    %v436 = vshrl.u32 %v435, 7
    %v437 = vsub.s32 0, %v436
    %v438 = vrot.slane %v433, %v437
    %v439 = vadd.f32 %v420, %v438
    %v440 = vadd.f32 %v429, %v438
    %v443 = vcombine.low %v439, %v440
    %v445 = vunpack.c.l.s4 1966171168
    %v446 = vunpack.c.0.s8 %v445
    %v447 = vlaneseq
    %v448 = vshrl.u32 %v447, 7
    %v449 = vsub.s32 %v446, %v448
    %v450 = vrot.slane %v443, %v449
    %v452 = vunpack.c.l.s4 1966171168
    %v453 = vunpack.c.0.s8 %v452
    %v454 = vlaneseq
    %v455 = vshrl.u32 %v454, 7
    %v456 = vsub.s32 %v453, %v455
    %v457 = vrot.slane %v450, %v456
    %v459 = vlaneseq
    %vm460 = vcmp.ge.s32.totalorder %v459, 0
    %vm461 = vcmp.lt.s32.totalorder %v459, 256
    %vm462 = vmand %vm460, %vm461
    %463 = vst.msk [vmem:[#allocation3] sm:$0x3] %vm462, %v457
    // Predicated region
    $region30: #{tpu_custom_call.1} parent=1 // pred_check
      _
    $region31: #{tpu_custom_call.1} parent=1 // pred_check_branch
      %465 = sbr.rel (0) target = $region33
    $region32: #{tpu_custom_call.1} parent=1 // pred_region
      %s467 = ssub.s32 32, 32
      %468 = vsyncadd [#allocation4], %s467
      %s470 = sshll.u32 [#allocation3], 4
      %s471 = int_to_ptr.vmem [resolvable:$true] %s470
      %473 = dma.vmem_to_hbm [thread:$0]  %s471, 32, %s7, [#allocation4]
    $region33: #{tpu_custom_call.1} parent=1 // pred_fallthru
      _
    // Predicated region
    $region34: #{tpu_custom_call.1} parent=1 // pred_check
      _
    $region35: #{tpu_custom_call.1} parent=1 // pred_check_branch
      %475 = sbr.rel (0) target = $region37
    $region36: #{tpu_custom_call.1} parent=1 // pred_region
      %476 = dma.done [#allocation4], 32
    $region37: #{tpu_custom_call.1} parent=1 // pred_fallthru
      _
    %477 = vsyncpa [#allocation4], 1

</llo_original>
